<compile_context>
chip_gen: v5e
topology: v5e:2x2
jax: 0.10.0
libtpu: 0.0.40
codegen_flags: <defaults>
</compile_context>

<pallas_src>
import jax
import jax.numpy as jnp
from jax.experimental import pallas as pl
from jax.experimental.pallas import tpu as pltpu

KH = KW = 3  # conv kernel size


def _round_up(v, m):
    return (v + m - 1) // m * m


def backbone_kernel(patch_ref, w_ref, b_ref, pool_ref, feat_ref):
    """One backbone (rgb OR depth) per grid step: im2col GEMM + bias + ReLU + GAP.

    patch_ref : (M, Kp)  bf16   im2col patches, K zero-padded to 128 (lane-dense)
    w_ref     : (Kp, Fp) bf16   conv weight reshaped (9*Cin, F), zero-padded
    b_ref     : (1, Fp)  f32    conv bias (zero-padded)
    pool_ref  : (N, M)   f32    global-average-pool expressed as a matmul operand
    feat_ref  : (N, Fp)  f32    pooled backbone features
    """
    # Single lane-dense GEMM on the MXU, f32 accumulation.
    acc = jnp.dot(patch_ref[...], w_ref[...], preferred_element_type=jnp.float32)
    acc = jnp.maximum(acc + b_ref[...], 0.0)        # bias + ReLU (VPU, f32)
    # Global average pool as a skinny matmul -> stays on the MXU, no XLU reduce.
    feat_ref[...] = jnp.dot(pool_ref[...], acc, preferred_element_type=jnp.float32)


def fusion_kernel(feat_ref, wfc_ref, bfc_ref, out_ref):
    """Epilogue: elementwise fusion of the two backbone features + Linear.

    feat_ref : (2, N, Fp) f32   [rgb_feat, depth_feat]
    wfc_ref  : (Fp, Cp)   bf16  fusion Linear weight (transposed, zero-padded)
    bfc_ref  : (1, Cp)    f32   fusion Linear bias (zero-padded)
    out_ref  : (N, Cp)    f32
    """
    fusion = feat_ref[0] * feat_ref[1]              # (N, Fp) f32 elementwise fusion
    out_ref[...] = (jnp.dot(fusion.astype(jnp.bfloat16), wfc_ref[...],
                            preferred_element_type=jnp.float32)
                    + bfc_ref[...])


def _im2col(img_nhwc_padded):
    """(N, H+2, W+2, Cin) zero-padded NHWC -> (N*H*W, 9*Cin) patches (tap-major)."""
    n, hp, wp, cin = img_nhwc_padded.shape
    h, w = hp - 2, wp - 2
    taps = [img_nhwc_padded[:, dy:dy + h, dx:dx + w, :]
            for dy in range(KH) for dx in range(KW)]
    patches = jnp.concatenate(taps, axis=-1)        # (N, H, W, 9*Cin)
    return patches.reshape(n * h * w, KH * KW * cin)


def rgbd_cnn_forward(x_nchw, y_nchw, params):
    # Glue: NCHW -> NHWC, zero-pad spatial dims by 1 for the 3x3 'same' conv.
    x = jnp.pad(jnp.transpose(x_nchw, (0, 2, 3, 1)).astype(jnp.float32),
                ((0, 0), (1, 1), (1, 1), (0, 0)))
    y = jnp.pad(jnp.transpose(y_nchw, (0, 2, 3, 1)).astype(jnp.float32),
                ((0, 0), (1, 1), (1, 1), (0, 0)))

    n, hp, wp, cin = x.shape
    h, w = hp - 2, wp - 2
    m = n * h * w
    feat = params["w_rgb"].shape[-1]
    classes = params["w_fc"].shape[-1]
    k = KH * KW * cin
    kp, fp, cp = _round_up(k, 128), _round_up(feat, 128), _round_up(classes, 128)

    # --- wrapper-side im2col + lane-dense padding + bf16 cast for MXU operands ---
    def prep_patches(img):
        p = _im2col(img)                                             # (M, K) f32
        return jnp.pad(p, ((0, 0), (0, kp - k))).astype(jnp.bfloat16)

    def prep_conv_w(wc):
        return jnp.pad(wc.reshape(k, feat),
                       ((0, kp - k), (0, fp - feat))).astype(jnp.bfloat16)

    def prep_conv_b(bc):
        return jnp.pad(bc.reshape(1, feat),
                       ((0, 0), (0, fp - feat))).astype(jnp.float32)

    patches = jnp.stack([prep_patches(x), prep_patches(y)])          # (2, M, Kp)
    w_conv = jnp.stack([prep_conv_w(params["w_rgb"]),
                        prep_conv_w(params["w_dep"])])               # (2, Kp, Fp)
    b_conv = jnp.stack([prep_conv_b(params["b_rgb"]),
                        prep_conv_b(params["b_dep"])])               # (2, 1, Fp)

    # Global average pool as a matmul operand: pool[i, i*HW:(i+1)*HW] = 1/HW.
    pool = jnp.repeat(jnp.eye(n, dtype=jnp.float32), h * w, axis=1) / float(h * w)

    # --- kernel 1: the two backbones, one per grid step (parallel on v7x) ---
    feats = pl.pallas_call(
        backbone_kernel,
        out_shape=jax.ShapeDtypeStruct((2, n, fp), jnp.float32),
        grid=(2,),
        in_specs=[
            pl.BlockSpec((None, m, kp), lambda s: (s, 0, 0)),
            pl.BlockSpec((None, kp, fp), lambda s: (s, 0, 0)),
            pl.BlockSpec((None, 1, fp), lambda s: (s, 0, 0)),
            pl.BlockSpec((n, m), lambda s: (0, 0)),
        ],
        out_specs=pl.BlockSpec((None, n, fp), lambda s: (s, 0, 0)),
        compiler_params=pltpu.CompilerParams(
            dimension_semantics=("parallel",),
            vmem_limit_bytes=32 * 1024 * 1024),
    )(patches, w_conv, b_conv, pool)

    # --- kernel 2: tiny fusion epilogue (fusion * W_fc + b) ---
    w_fc = jnp.pad(params["w_fc"],
                   ((0, fp - feat), (0, cp - classes))).astype(jnp.bfloat16)
    b_fc = jnp.pad(params["b_fc"].reshape(1, classes),
                   ((0, 0), (0, cp - classes))).astype(jnp.float32)

    vmem_spec = pl.BlockSpec(memory_space=pltpu.MemorySpace.VMEM)
    out_padded = pl.pallas_call(
        fusion_kernel,
        out_shape=jax.ShapeDtypeStruct((n, cp), jnp.float32),
        in_specs=[vmem_spec] * 3,
        out_specs=vmem_spec,
        compiler_params=pltpu.CompilerParams(vmem_limit_bytes=32 * 1024 * 1024),
    )(feats, w_fc, b_fc)

    return out_padded[:, :classes]


def reference_forward(x_nchw, y_nchw, params):
    """Pure-JAX f32 reference (lax conv) to verify kernel semantics."""
    def backbone(img, w, b):
        out = jax.lax.conv_general_dilated(
            img.astype(jnp.float32), w, window_strides=(1, 1), padding="SAME",
            dimension_numbers=("NCHW", "HWIO", "NCHW"))
        out = jax.nn.relu(out + b.reshape(1, -1, 1, 1))
        return jnp.mean(out, axis=(2, 3))
    rgb = backbone(x_nchw, params["w_rgb"], params["b_rgb"])
    dep = backbone(y_nchw, params["w_dep"], params["b_dep"])
    return (rgb * dep) @ params["w_fc"] + params["b_fc"].reshape(1, -1)


def init_params(key, cin=4, feat=32, n_classes=38):
    ks = jax.random.split(key, 6)
    s_conv = 1.0 / jnp.sqrt(3.0 * 3.0 * cin)
    s_fc = 1.0 / jnp.sqrt(float(feat))
    return {
        "w_rgb": jax.random.normal(ks[0], (3, 3, cin, feat), jnp.float32) * s_conv,
        "b_rgb": jax.random.normal(ks[1], (1, feat), jnp.float32) * s_conv,
        "w_dep": jax.random.normal(ks[2], (3, 3, cin, feat), jnp.float32) * s_conv,
        "b_dep": jax.random.normal(ks[3], (1, feat), jnp.float32) * s_conv,
        # nn.Linear weight is (classCount, F) in torch; stored transposed here.
        "w_fc": jax.random.normal(ks[4], (feat, n_classes), jnp.float32) * s_fc,
        "b_fc": jax.random.normal(ks[5], (1, n_classes), jnp.float32) * s_fc,
    }


if __name__ == "__main__":
    key = jax.random.PRNGKey(0)
    k_x, k_y, k_p = jax.random.split(key, 3)

    N, CIN, H, W = 2, 4, 16, 16
    FEAT, CLASSES = 32, 38

    x = jax.random.normal(k_x, (N, CIN, H, W), jnp.float32)   # rgb-like input
    y = jax.random.normal(k_y, (N, CIN, H, W), jnp.float32)   # depth-like input
    params = init_params(k_p, cin=CIN, feat=FEAT, n_classes=CLASSES)

    fwd = jax.jit(rgbd_cnn_forward)
    out = jax.block_until_ready(fwd(x, y, params))

    ref = jax.block_until_ready(reference_forward(x, y, params))
    assert out.shape == (N, CLASSES)
    # Tolerance loosened vs the f32-only version because matmul operands are
    # bf16 (f32 accumulation); observed error is O(1e-3) at these magnitudes.
    assert jnp.allclose(out, ref, rtol=5e-2, atol=5e-2), "mismatch vs reference"

    print("KERNEL_OK")
</pallas_src>

<mosaic_0001>
module attributes {stable_mosaic.version = 11 : i64} {
  func.func @backbone_kernel(%arg0: i32, %arg1: memref<1x512x128xbf16, #tpu.memory_space<vmem>>, %arg2: memref<1x128x128xbf16, #tpu.memory_space<vmem>>, %arg3: memref<1x1x128xf32, #tpu.memory_space<vmem>>, %arg4: memref<2x512xf32, #tpu.memory_space<vmem>>, %arg5: memref<1x2x128xf32, #tpu.memory_space<vmem>>) attributes {dimension_semantics = [#tpu.dimension_semantics<parallel>], iteration_bounds = array<i64: 2>, scalar_prefetch = 0 : i64, scratch_operands = 0 : i64, tpu.core_type = #tpu.core_type<tc>, window_params = [{transform_indices = @transform_0, window_bounds = array<i64: 1, 512, 128>}, {transform_indices = @transform_1, window_bounds = array<i64: 1, 128, 128>}, {transform_indices = @transform_2, window_bounds = array<i64: 1, 1, 128>}, {pipeline_mode = #tpu.pipeline_mode<synchronous>, transform_indices = @transform_3, window_bounds = array<i64: 2, 512>}, {transform_indices = @transform_4, window_bounds = array<i64: 1, 2, 128>}]} {
    %c0 = arith.constant 0 : index
    %c0_0 = arith.constant 0 : index
    %c0_1 = arith.constant 0 : index
    %0 = vector.load %arg1[%c0, %c0_0, %c0_1] : memref<1x512x128xbf16, #tpu.memory_space<vmem>>, vector<1x512x128xbf16>
    %1 = vector.shape_cast %0 : vector<1x512x128xbf16> to vector<512x128xbf16>
    %c0_2 = arith.constant 0 : index
    %c0_3 = arith.constant 0 : index
    %c0_4 = arith.constant 0 : index
    %2 = vector.load %arg2[%c0_2, %c0_3, %c0_4] : memref<1x128x128xbf16, #tpu.memory_space<vmem>>, vector<1x128x128xbf16>
    %3 = vector.shape_cast %2 : vector<1x128x128xbf16> to vector<128x128xbf16>
    %cst = arith.constant dense<0.000000e+00> : vector<512x128xf32>
    %4 = tpu.matmul %1, %3, %cst {dimension_numbers = #tpu.dot_dimension_numbers<[1], [0], [0], [1], [0, 0, 1, 1], [], []>} : vector<512x128xbf16>, vector<128x128xbf16>, vector<512x128xf32> -> vector<512x128xf32>
    %c0_5 = arith.constant 0 : index
    %c0_6 = arith.constant 0 : index
    %c0_7 = arith.constant 0 : index
    %5 = vector.load %arg3[%c0_5, %c0_6, %c0_7] : memref<1x1x128xf32, #tpu.memory_space<vmem>>, vector<1x1x128xf32>
    %6 = vector.shape_cast %5 : vector<1x1x128xf32> to vector<1x128xf32>
    %7 = vector.broadcast %6 : vector<1x128xf32> to vector<512x128xf32>
    %8 = arith.addf %4, %7 : vector<512x128xf32>
    %cst_8 = arith.constant 0.000000e+00 : f32
    %9 = vector.broadcast %cst_8 : f32 to vector<512x128xf32>
    %10 = arith.maximumf %8, %9 : vector<512x128xf32>
    %c0_9 = arith.constant 0 : index
    %c0_10 = arith.constant 0 : index
    %11 = vector.load %arg4[%c0_9, %c0_10] : memref<2x512xf32, #tpu.memory_space<vmem>>, vector<2x512xf32>
    %cst_11 = arith.constant dense<0.000000e+00> : vector<2x128xf32>
    %12 = tpu.matmul %11, %10, %cst_11 {dimension_numbers = #tpu.dot_dimension_numbers<[1], [0], [0], [1], [0, 0, 1, 1], [], []>} : vector<2x512xf32>, vector<512x128xf32>, vector<2x128xf32> -> vector<2x128xf32>
    %c0_12 = arith.constant 0 : index
    %c0_13 = arith.constant 0 : index
    %c0_14 = arith.constant 0 : index
    %13 = vector.load %arg5[%c0_12, %c0_13, %c0_14] : memref<1x2x128xf32, #tpu.memory_space<vmem>>, vector<1x2x128xf32>
    %14 = vector.shape_cast %13 : vector<1x2x128xf32> to vector<2x128xf32>
    %15 = vector.shape_cast %12 : vector<2x128xf32> to vector<1x2x128xf32>
    tpu.vector_store %arg5[%c0_12, %c0_13, %c0_14], %15 {strides = array<i32>} : memref<1x2x128xf32, #tpu.memory_space<vmem>>, vector<1x2x128xf32>,
    return
  }
  func.func @transform_0(%arg0: i32) -> (i32, i32, i32) {
    %c0_i32 = arith.constant 0 : i32
    %c0_i32_0 = arith.constant 0 : i32
    %c0_i32_1 = arith.constant 0 : i32
    return %arg0, %c0_i32, %c0_i32_0 : i32, i32, i32
  }
  func.func @transform_1(%arg0: i32) -> (i32, i32, i32) {
    %c0_i32 = arith.constant 0 : i32
    %c0_i32_0 = arith.constant 0 : i32
    %c0_i32_1 = arith.constant 0 : i32
    return %arg0, %c0_i32, %c0_i32_0 : i32, i32, i32
  }
  func.func @transform_2(%arg0: i32) -> (i32, i32, i32) {
    %c0_i32 = arith.constant 0 : i32
    %c0_i32_0 = arith.constant 0 : i32
    %c0_i32_1 = arith.constant 0 : i32
    return %arg0, %c0_i32, %c0_i32_0 : i32, i32, i32
  }
  func.func @transform_3(%arg0: i32) -> (i32, i32) {
    %c0_i32 = arith.constant 0 : i32
    %c0_i32_0 = arith.constant 0 : i32
    %c0_i32_1 = arith.constant 0 : i32
    return %c0_i32, %c0_i32_0 : i32, i32
  }
  func.func @transform_4(%arg0: i32) -> (i32, i32, i32) {
    %c0_i32 = arith.constant 0 : i32
    %c0_i32_0 = arith.constant 0 : i32
    %c0_i32_1 = arith.constant 0 : i32
    return %arg0, %c0_i32, %c0_i32_0 : i32, i32, i32
  }
}

module attributes {stable_mosaic.version = 11 : i64} {
  func.func @fusion_kernel(%arg0: memref<2x2x128xf32, #tpu.memory_space<vmem>>, %arg1: memref<128x128xbf16, #tpu.memory_space<vmem>>, %arg2: memref<1x128xf32, #tpu.memory_space<vmem>>, %arg3: memref<2x128xf32, #tpu.memory_space<vmem>>) attributes {dimension_semantics = [], scalar_prefetch = 0 : i64, scratch_operands = 0 : i64, tpu.core_type = #tpu.core_type<tc>} {
    %c0 = arith.constant 0 : index
    %c0_0 = arith.constant 0 : index
    %c0_1 = arith.constant 0 : index
    %0 = vector.load %arg0[%c0, %c0_0, %c0_1] : memref<2x2x128xf32, #tpu.memory_space<vmem>>, vector<1x2x128xf32>
    %1 = vector.shape_cast %0 : vector<1x2x128xf32> to vector<2x128xf32>
    %c1 = arith.constant 1 : index
    %c0_2 = arith.constant 0 : index
    %c0_3 = arith.constant 0 : index
    %2 = vector.load %arg0[%c1, %c0_2, %c0_3] : memref<2x2x128xf32, #tpu.memory_space<vmem>>, vector<1x2x128xf32>
    %3 = vector.shape_cast %2 : vector<1x2x128xf32> to vector<2x128xf32>
    %4 = arith.mulf %1, %3 : vector<2x128xf32>
    %5 = arith.truncf %4 : vector<2x128xf32> to vector<2x128xbf16>
    %c0_4 = arith.constant 0 : index
    %c0_5 = arith.constant 0 : index
    %6 = vector.load %arg1[%c0_4, %c0_5] : memref<128x128xbf16, #tpu.memory_space<vmem>>, vector<128x128xbf16>
    %cst = arith.constant dense<0.000000e+00> : vector<2x128xf32>
    %7 = tpu.matmul %5, %6, %cst {dimension_numbers = #tpu.dot_dimension_numbers<[1], [0], [0], [1], [0, 0, 1, 1], [], []>} : vector<2x128xbf16>, vector<128x128xbf16>, vector<2x128xf32> -> vector<2x128xf32>
    %c0_6 = arith.constant 0 : index
    %c0_7 = arith.constant 0 : index
    %8 = vector.load %arg2[%c0_6, %c0_7] : memref<1x128xf32, #tpu.memory_space<vmem>>, vector<1x128xf32>
    %9 = vector.broadcast %8 : vector<1x128xf32> to vector<2x128xf32>
    %10 = arith.addf %7, %9 : vector<2x128xf32>
    %c0_8 = arith.constant 0 : index
    %c0_9 = arith.constant 0 : index
    %11 = vector.load %arg3[%c0_8, %c0_9] : memref<2x128xf32, #tpu.memory_space<vmem>>, vector<2x128xf32>
    tpu.vector_store %arg3[%c0_8, %c0_9], %10 {strides = array<i32>} : memref<2x128xf32, #tpu.memory_space<vmem>>, vector<2x128xf32>,
    return
  }
}

</mosaic_0001>

<llo_original>
// kernel: rgbd_cnn_forward.3
$region0: #{rgbd_cnn_forward.3}
  #allocation0 [shape = 'u32[]', space=smem, size = 0x4, offset = 0x4, fixed_abs, tag = 'smem constant byte address 0x4 - core index']
  #allocation1 [shape = 'u32[72,128]{1,0:T(1,128)}', space=vmem, size = 0x9000, scoped, tag = 'internal scratch']
  %s0 = inlined_call_operand.vmem [shape: f32[2,2,128], index: 0, kind: input, shape index: {}]
  %s1 = inlined_call_operand.vmem [shape: bf16[128,128], index: 1, kind: input, shape index: {}]
  %s2 = inlined_call_operand.vmem [shape: f32[1,128], index: 2, kind: input, shape index: {}]
  %s3 = inlined_call_operand.hbm [shape: f32[2,128], index: 3, kind: output, shape index: {}]
  %s4 = sld [smem:[#allocation0]]
  $region22: #{rgbd_cnn_forward.3} parent=0
    _
  %s6 = ssub.s32 1, %s4
  %s7 = scalar_select 0, %s6, %s4
  $region1: #{rgbd_cnn_forward.3} parent=0
    #allocation2 [shape = 'u8[1024]{0}', space=vmem, size = 0x400, scoped, tag = 'output window, operand 0, single buffered']
    #allocation3 [shape = 's32[1]{0}', space=sflag, size = 0x4, scoped, tag = 'scoped memory for rgbd_cnn_forward.3']
    %8 = vsyncpa [#allocation3], 0
    // Predicated region
    $region2: #{rgbd_cnn_forward.3} parent=1 // pred_check
      _
    $region3: #{rgbd_cnn_forward.3} parent=1 // pred_check_branch
      %10 = sbr.rel (0) target = $region5
    $region4: #{rgbd_cnn_forward.3} parent=1 // pred_region
      _
    $region5: #{rgbd_cnn_forward.3} parent=1 // pred_fallthru
      _
    // Predicated region
    $region6: #{rgbd_cnn_forward.3} parent=1 // pred_check
      _
    $region7: #{rgbd_cnn_forward.3} parent=1 // pred_check_branch
      %12 = sbr.rel (0) target = $region9
    $region8: #{rgbd_cnn_forward.3} parent=1 // pred_region
      _
    $region9: #{rgbd_cnn_forward.3} parent=1 // pred_fallthru
      _
    // Predicated region
    $region10: #{rgbd_cnn_forward.3} parent=1 // pred_check
      _
    $region11: #{rgbd_cnn_forward.3} parent=1 // pred_check_branch
      %14 = sbr.rel (0) target = $region13
    $region12: #{rgbd_cnn_forward.3} parent=1 // pred_region
      _
    $region13: #{rgbd_cnn_forward.3} parent=1 // pred_fallthru
      _
    %v15 = vld [vmem:[%s0] sm:$0x3]
    %s16 = scalar_lea.vmem %s0, 2
    %v17 = vld [vmem:[%s16] sm:$0x3]
    %v18 = vmul.f32 %v15, %v17
    %v19 = vpack.c.bf16 %v18, %v18
    %v20 = vld [vmem:[%s1] sm:$0xf]
    %v21 = vld [vmem:[%s1 + $0x4] sm:$0xf]
    %v22 = vld [vmem:[%s1 + $0x8] sm:$0xf]
    %v23 = vld [vmem:[%s1 + $0xc] sm:$0xf]
    %v24 = vld [vmem:[%s1 + $0x10] sm:$0xf]
    %v25 = vld [vmem:[%s1 + $0x14] sm:$0xf]
    %v26 = vld [vmem:[%s1 + $0x18] sm:$0xf]
    %v27 = vld [vmem:[%s1 + $0x1c] sm:$0xf]
    %v28 = vld [vmem:[%s1 + $0x20] sm:$0xf]
    %v29 = vld [vmem:[%s1 + $0x24] sm:$0xf]
    %v30 = vld [vmem:[%s1 + $0x28] sm:$0xf]
    %v31 = vld [vmem:[%s1 + $0x2c] sm:$0xf]
    %v32 = vld [vmem:[%s1 + $0x30] sm:$0xf]
    %v33 = vld [vmem:[%s1 + $0x34] sm:$0xf]
    %v34 = vld [vmem:[%s1 + $0x38] sm:$0xf]
    %v35 = vld [vmem:[%s1 + $0x3c] sm:$0xf]
    %v36 = vld [vmem:[%s2] sm:$0x1]
    %v38 = vperm.slane %v36, 0
    %v56 = vunpack.c.l.b16 %v20
    %v57 = vunpack.c.l.b16 %v21
    %v58 = vunpack.c.l.b16 %v22
    %v59 = vunpack.c.l.b16 %v23
    %v60 = vunpack.c.l.b16 %v24
    %v61 = vunpack.c.l.b16 %v25
    %v62 = vunpack.c.l.b16 %v26
    %v63 = vunpack.c.l.b16 %v27
    %v64 = vunpack.c.l.b16 %v28
    %v65 = vunpack.c.l.b16 %v29
    %v66 = vunpack.c.l.b16 %v30
    %v67 = vunpack.c.l.b16 %v31
    %v68 = vunpack.c.l.b16 %v32
    %v69 = vunpack.c.l.b16 %v33
    %v70 = vunpack.c.l.b16 %v34
    %v71 = vunpack.c.l.b16 %v35
    %v72 = vpack.c.b16 %v57, %v56
    %v73 = vpack.c.b16 %v59, %v58
    %v74 = vpack.c.b16 %v61, %v60
    %v75 = vpack.c.b16 %v63, %v62
    %v76 = vpack.c.b16 %v65, %v64
    %v77 = vpack.c.b16 %v67, %v66
    %v78 = vpack.c.b16 %v69, %v68
    %v79 = vpack.c.b16 %v71, %v70
    %88 = vmatpush.bf16.msra.mxu0 %v79
    %89 = vmatpush.bf16.msra.mxu0 %v78
    %90 = vmatpush.bf16.msra.mxu0 %v77
    %91 = vmatpush.bf16.msra.mxu0 %v76
    %92 = vmatpush.bf16.msra.mxu0 %v75
    %93 = vmatpush.bf16.msra.mxu0 %v74
    %94 = vmatpush.bf16.msra.mxu0 %v73
    %95 = vmatpush.bf16.msra.mxu0 %v72
    %96 = vmatmul.bf16.gmra.mxu0 %v19
    %v97 = vpop.f32.mrf.mxu0
    %v98 = vadd.f32 %v38, %v97
    %v99 = vpop.f32.mrf.mxu0
    %100 = vdwg.mxu0
    %101 = vst [vmem:[#allocation2] sm:$0x3] %v98
    // Predicated region
    $region14: #{rgbd_cnn_forward.3} parent=1 // pred_check
      _
    $region15: #{rgbd_cnn_forward.3} parent=1 // pred_check_branch
      %103 = sbr.rel (0) target = $region17
    $region16: #{rgbd_cnn_forward.3} parent=1 // pred_region
      %105 = vsyncadd [#allocation3], 0
      %s107 = sshll.u32 [#allocation2], 4
      %s108 = int_to_ptr.vmem [resolvable:$true] %s107
      %s109 = sshll.u32 %s3, 4
      %s110 = int_to_ptr.hbm [resolvable:$true] %s109
      %112 = dma.vmem_to_hbm [thread:$0]  %s108, 32, %s110, [#allocation3]
    $region17: #{rgbd_cnn_forward.3} parent=1 // pred_fallthru
      _
    // Predicated region
    $region18: #{rgbd_cnn_forward.3} parent=1 // pred_check
      _
    $region19: #{rgbd_cnn_forward.3} parent=1 // pred_check_branch
      %114 = sbr.rel (0) target = $region21
    $region20: #{rgbd_cnn_forward.3} parent=1 // pred_region
      %116 = dma.done [#allocation3], 32
    $region21: #{rgbd_cnn_forward.3} parent=1 // pred_fallthru
      _
    %117 = vsyncpa [#allocation3], 1

// kernel: rgbd_cnn_forward.2
$region0: #{rgbd_cnn_forward.2}
  #allocation0 [shape = 'u32[]', space=smem, size = 0x4, offset = 0x4, fixed_abs, tag = 'smem constant byte address 0x4 - core index']
  #allocation1 [shape = 'u32[72,128]{1,0:T(1,128)}', space=vmem, size = 0x9000, scoped, tag = 'internal scratch']
  %s0 = inlined_call_operand.vmem [shape: bf16[2,512,128], index: 0, kind: input, shape index: {}]
  %s1 = inlined_call_operand.vmem [shape: bf16[2,128,128], index: 1, kind: input, shape index: {}]
  %s2 = inlined_call_operand.vmem [shape: f32[2,1,128], index: 2, kind: input, shape index: {}]
  %s3 = inlined_call_operand.vmem [shape: f32[2,512], index: 3, kind: input, shape index: {}]
  %s4 = inlined_call_operand.vmem [shape: f32[2,2,128], index: 4, kind: output, shape index: {}]
  %s5 = sld [smem:[#allocation0]]
  $region49: #{rgbd_cnn_forward.2} parent=0
    _
  %s7 = ssub.s32 1, %s5
  %s8 = scalar_select 0, %s7, %s5
  loop: start=0, step=1, limit=4
  $region2: #{rgbd_cnn_forward.2} parent=0 // loop_pre_header
    _
  $region3: #{rgbd_cnn_forward.2} parent=0 // loop_header
    %s10 = sphi 0, %s14
    %p11 = scmp.ge.s32.totalorder %s10, 4
    %s20 = sphi 0, %s22
    %s23 = sphi 0, %s20
    %s24 = sphi 0, %s23
    %s40 = sphi 0, %s24
    %s46 = sphi 0, %s48
    %s49 = sphi 0, %s46
    %s50 = sphi 0, %s49
    %s66 = sphi 0, %s50
    %s72 = sphi 0, %s74
    %s75 = sphi 0, %s72
    %s76 = sphi 0, %s75
    %s92 = sphi 0, %s76
    %s96 = sphi 0, %s96
    %s98 = sphi 0, %s96
    %s99 = sphi 0, %s98
    %s113 = sphi 0, %s99
    %s119 = sphi 0, %s121
    %s122 = sphi 0, %s119
    %s123 = sphi 0, %s122
    %s139 = sphi 0, %s123
  $region4: #{rgbd_cnn_forward.2} parent=0 // loop_header_branch
    %13 = sbr.rel (%p11) target = $region8
  $region5: #{rgbd_cnn_forward.2} parent=0 // loop_body
    %s15 = ssub.s32 %s10, 1
    %s16 = ssub.s32 %s10, 2
    %s17 = sadd.s32 %s10, 1
    %s18 = ssub.s32 %s10, %s17
    %p19 = scmp.eq.s32.totalorder %s18, 0
    %s21 = sadd.s32 %s20, 1
    %s22 = scalar_select %p19, %s20, %s21
    %p25 = pneg %p19
    %p26 = scmp.eq.s32.totalorder %s10, 1
    %p27 = por %p25, %p26
    %p28 = scmp.ne.s32.totalorder %s20, %s23
    %p29 = scmp.eq.s32.totalorder %s10, 0
    %p30 = por %p28, %p29
    %p31 = scmp.ne.s32.totalorder %s20, %s23
    %p32 = scmp.eq.s32.totalorder %s15, 1
    %p33 = por %p31, %p32
    %p34 = scmp.ne.s32.totalorder %s23, %s24
    %p35 = scmp.eq.s32.totalorder %s15, 0
    %p36 = por %p34, %p35
    %p37 = scmp.ne.s32.totalorder %s23, %s24
    %p38 = scmp.eq.s32.totalorder %s16, 1
    %p39 = por %p37, %p38
    %p41 = scmp.ne.s32.totalorder %s24, %s40
    %p42 = scmp.eq.s32.totalorder %s16, 0
    %p43 = por %p41, %p42
    %s44 = ssub.s32 %s10, %s17
    %p45 = scmp.eq.s32.totalorder %s44, 0
    %s47 = sadd.s32 %s46, 1
    %s48 = scalar_select %p45, %s46, %s47
    %p51 = pneg %p45
    %p52 = scmp.eq.s32.totalorder %s10, 1
    %p53 = por %p51, %p52
    %p54 = scmp.ne.s32.totalorder %s46, %s49
    %p55 = scmp.eq.s32.totalorder %s10, 0
    %p56 = por %p54, %p55
    %p57 = scmp.ne.s32.totalorder %s46, %s49
    %p58 = scmp.eq.s32.totalorder %s15, 1
    %p59 = por %p57, %p58
    %p60 = scmp.ne.s32.totalorder %s49, %s50
    %p61 = scmp.eq.s32.totalorder %s15, 0
    %p62 = por %p60, %p61
    %p63 = scmp.ne.s32.totalorder %s49, %s50
    %p64 = scmp.eq.s32.totalorder %s16, 1
    %p65 = por %p63, %p64
    %p67 = scmp.ne.s32.totalorder %s50, %s66
    %p68 = scmp.eq.s32.totalorder %s16, 0
    %p69 = por %p67, %p68
    %s70 = ssub.s32 %s10, %s17
    %p71 = scmp.eq.s32.totalorder %s70, 0
    %s73 = sadd.s32 %s72, 1
    %s74 = scalar_select %p71, %s72, %s73
    %p77 = pneg %p71
    %p78 = scmp.eq.s32.totalorder %s10, 1
    %p79 = por %p77, %p78
    %p80 = scmp.ne.s32.totalorder %s72, %s75
    %p81 = scmp.eq.s32.totalorder %s10, 0
    %p82 = por %p80, %p81
    %p83 = scmp.ne.s32.totalorder %s72, %s75
    %p84 = scmp.eq.s32.totalorder %s15, 1
    %p85 = por %p83, %p84
    %p86 = scmp.ne.s32.totalorder %s75, %s76
    %p87 = scmp.eq.s32.totalorder %s15, 0
    %p88 = por %p86, %p87
    %p89 = scmp.ne.s32.totalorder %s75, %s76
    %p90 = scmp.eq.s32.totalorder %s16, 1
    %p91 = por %p89, %p90
    %p93 = scmp.ne.s32.totalorder %s76, %s92
    %p94 = scmp.eq.s32.totalorder %s16, 0
    %p95 = por %p93, %p94
    %s97 = sadd.s32 %s96, 1
    %p100 = scmp.eq.s32.totalorder %s10, 1
    %p101 = scmp.ne.s32.totalorder %s96, %s98
    %p102 = scmp.eq.s32.totalorder %s10, 0
    %p103 = por %p101, %p102
    %p104 = scmp.ne.s32.totalorder %s96, %s98
    %p105 = scmp.eq.s32.totalorder %s15, 1
    %p106 = por %p104, %p105
    %p107 = scmp.ne.s32.totalorder %s98, %s99
    %p108 = scmp.eq.s32.totalorder %s15, 0
    %p109 = por %p107, %p108
    %p110 = scmp.ne.s32.totalorder %s98, %s99
    %p111 = scmp.eq.s32.totalorder %s16, 1
    %p112 = por %p110, %p111
    %p114 = scmp.ne.s32.totalorder %s99, %s113
    %p115 = scmp.eq.s32.totalorder %s16, 0
    %p116 = por %p114, %p115
    %s117 = ssub.s32 %s10, %s17
    %p118 = scmp.eq.s32.totalorder %s117, 0
    %s120 = sadd.s32 %s119, 1
    %s121 = scalar_select %p118, %s119, %s120
    %p124 = pneg %p118
    %p125 = scmp.eq.s32.totalorder %s10, 1
    %p126 = por %p124, %p125
    %p127 = scmp.ne.s32.totalorder %s119, %s122
    %p128 = scmp.eq.s32.totalorder %s10, 0
    %p129 = por %p127, %p128
    %p130 = scmp.ne.s32.totalorder %s119, %s122
    %p131 = scmp.eq.s32.totalorder %s15, 1
    %p132 = por %p130, %p131
    %p133 = scmp.ne.s32.totalorder %s122, %s123
    %p134 = scmp.eq.s32.totalorder %s15, 0
    %p135 = por %p133, %p134
    %p136 = scmp.ne.s32.totalorder %s122, %s123
    %p137 = scmp.eq.s32.totalorder %s16, 1
    %p138 = por %p136, %p137
    %p140 = scmp.ne.s32.totalorder %s123, %s139
    %p141 = scmp.eq.s32.totalorder %s16, 0
    %p142 = por %p140, %p141
    %p143 = scmp.le.s32.totalorder 1, %s10
    %p144 = scmp.lt.s32.totalorder %s10, 3
    %p145 = pnand %p143, %p144
    %p146 = pneg %p145
    // Predicated region
    $region9: #{rgbd_cnn_forward.2} parent=5 // pred_check
      _
    $region10: #{rgbd_cnn_forward.2} parent=5 // pred_check_branch
      %148 = sbr.rel (%p145) target = $region12
    $region11: #{rgbd_cnn_forward.2} parent=5 // pred_region
      %s149 = ssub.s32 %s10, 1
      // Predicated region
      $region13: #{rgbd_cnn_forward.2} parent=11 // pred_check
        %p150 = pneg %p109
      $region14: #{rgbd_cnn_forward.2} parent=11 // pred_check_branch
        %152 = sbr.rel (%p150) target = $region16
      $region15: #{rgbd_cnn_forward.2} parent=11 // pred_region
        _
      $region16: #{rgbd_cnn_forward.2} parent=11 // pred_fallthru
        _
    $region12: #{rgbd_cnn_forward.2} parent=5 // pred_fallthru
      _
    %p153 = scmp.lt.s32.totalorder %s10, 2
    // Predicated region
    $region17: #{rgbd_cnn_forward.2} parent=5 // pred_check
      %p154 = pneg %p153
    $region18: #{rgbd_cnn_forward.2} parent=5 // pred_check_branch
      %156 = sbr.rel (%p154) target = $region20
    $region19: #{rgbd_cnn_forward.2} parent=5 // pred_region
      // Predicated region
      $region21: #{rgbd_cnn_forward.2} parent=19 // pred_check
        %p157 = pneg %p30
      $region22: #{rgbd_cnn_forward.2} parent=19 // pred_check_branch
        %159 = sbr.rel (%p157) target = $region24
      $region23: #{rgbd_cnn_forward.2} parent=19 // pred_region
        %p160 = scmp.lt.s32.totalorder %s10, 1
        %s161 = scalar_select %p160, %s10, 1
        %s162 = smul.addr %s161, 64
        %s163 = smul.addr %s162, 4
        %s164 = scalar_lea.vmem %s0, %s163
      $region24: #{rgbd_cnn_forward.2} parent=19 // pred_fallthru
        _
      // Predicated region
      $region25: #{rgbd_cnn_forward.2} parent=19 // pred_check
        %p165 = pneg %p56
      $region26: #{rgbd_cnn_forward.2} parent=19 // pred_check_branch
        %167 = sbr.rel (%p165) target = $region28
      $region27: #{rgbd_cnn_forward.2} parent=19 // pred_region
        %p168 = scmp.lt.s32.totalorder %s10, 1
        %s169 = scalar_select %p168, %s10, 1
        %s170 = smul.addr %s169, 16
        %s171 = smul.addr %s170, 4
        %s172 = scalar_lea.vmem %s1, %s171
      $region28: #{rgbd_cnn_forward.2} parent=19 // pred_fallthru
        _
      // Predicated region
      $region29: #{rgbd_cnn_forward.2} parent=19 // pred_check
        %p173 = pneg %p82
      $region30: #{rgbd_cnn_forward.2} parent=19 // pred_check_branch
        %175 = sbr.rel (%p173) target = $region32
      $region31: #{rgbd_cnn_forward.2} parent=19 // pred_region
        %p176 = scmp.lt.s32.totalorder %s10, 1
        %s177 = scalar_select %p176, %s10, 1
        %s178 = scalar_lea.vmem %s2, %s177
      $region32: #{rgbd_cnn_forward.2} parent=19 // pred_fallthru
        _
    $region20: #{rgbd_cnn_forward.2} parent=5 // pred_fallthru
      _
    %p179 = scmp.le.s32.totalorder 1, %s10
    %p180 = scmp.lt.s32.totalorder %s10, 3
    %p181 = pnand %p179, %p180
    %p182 = pneg %p181
    // Predicated region
    $region33: #{rgbd_cnn_forward.2} parent=5 // pred_check
      _
    $region34: #{rgbd_cnn_forward.2} parent=5 // pred_check_branch
      %184 = sbr.rel (%p181) target = $region36
    $region35: #{rgbd_cnn_forward.2} parent=5 // pred_region
      %s185 = ssub.s32 %s10, 1
      %p186 = scmp.lt.s32.totalorder %s15, 1
      %s187 = scalar_select %p186, %s15, 1
      %s188 = smul.addr %s187, 64
      %s189 = smul.addr %s188, 4
      %s190 = scalar_lea.vmem %s0, %s189
      %p191 = pneg %p36
      %p192 = pneg %p33
      %p193 = scmp.lt.s32.totalorder %s15, 1
      %s194 = scalar_select %p193, %s15, 1
      %s195 = smul.addr %s194, 16
      %s196 = smul.addr %s195, 4
      %s197 = scalar_lea.vmem %s1, %s196
      %p198 = pneg %p62
      %p199 = pneg %p59
      %p200 = scmp.lt.s32.totalorder %s15, 1
      %s201 = scalar_select %p200, %s15, 1
      %s202 = scalar_lea.vmem %s2, %s201
      %p203 = pneg %p88
      %p204 = pneg %p85
      %p205 = pneg %p109
      %p206 = pneg %p106
      %p207 = pneg %p135
      %p208 = pneg %p132
      %p209 = scmp.lt.s32.totalorder %s15, 1
      %s210 = scalar_select %p209, %s15, 1
      %s211 = smul.addr %s210, 2
      %s212 = scalar_lea.vmem %s4, %s211
      %p213 = scmp.lt.s32.totalorder %s15, 1
      %s214 = scalar_select %p213, %s15, 1
      %s215 = smul.addr %s214, 64
      %s216 = smul.addr %s215, 4
      %s217 = scalar_lea.vmem %s0, %s216
      %p218 = scmp.lt.s32.totalorder %s15, 1
      %s219 = scalar_select %p218, %s15, 1
      %s220 = smul.addr %s219, 16
      %s221 = smul.addr %s220, 4
      %s222 = scalar_lea.vmem %s1, %s221
      %p223 = scmp.lt.s32.totalorder %s15, 1
      %s224 = scalar_select %p223, %s15, 1
      %s225 = scalar_lea.vmem %s2, %s224
      %p226 = scmp.lt.s32.totalorder %s15, 1
      %s227 = scalar_select %p226, %s15, 1
      %s228 = smul.addr %s227, 2
      %s229 = scalar_lea.vmem %s4, %s228
      %v230 = vld [vmem:[%s217] sm:$0xf]
      %v231 = vld [vmem:[%s217 + $0x4] sm:$0xf]
      %v232 = vld [vmem:[%s217 + $0x8] sm:$0xf]
      %v233 = vld [vmem:[%s217 + $0xc] sm:$0xf]
      %v234 = vld [vmem:[%s217 + $0x10] sm:$0xf]
      %v235 = vld [vmem:[%s217 + $0x14] sm:$0xf]
      %v236 = vld [vmem:[%s217 + $0x18] sm:$0xf]
      %v237 = vld [vmem:[%s217 + $0x1c] sm:$0xf]
      %v238 = vld [vmem:[%s217 + $0x20] sm:$0xf]
      %v239 = vld [vmem:[%s217 + $0x24] sm:$0xf]
      %v240 = vld [vmem:[%s217 + $0x28] sm:$0xf]
      %v241 = vld [vmem:[%s217 + $0x2c] sm:$0xf]
      %v242 = vld [vmem:[%s217 + $0x30] sm:$0xf]
      %v243 = vld [vmem:[%s217 + $0x34] sm:$0xf]
      %v244 = vld [vmem:[%s217 + $0x38] sm:$0xf]
      %v245 = vld [vmem:[%s217 + $0x3c] sm:$0xf]
      %v246 = vld [vmem:[%s217 + $0x40] sm:$0xf]
      %v247 = vld [vmem:[%s217 + $0x44] sm:$0xf]
      %v248 = vld [vmem:[%s217 + $0x48] sm:$0xf]
      %v249 = vld [vmem:[%s217 + $0x4c] sm:$0xf]
      %v250 = vld [vmem:[%s217 + $0x50] sm:$0xf]
      %v251 = vld [vmem:[%s217 + $0x54] sm:$0xf]
      %v252 = vld [vmem:[%s217 + $0x58] sm:$0xf]
      %v253 = vld [vmem:[%s217 + $0x5c] sm:$0xf]
      %v254 = vld [vmem:[%s217 + $0x60] sm:$0xf]
      %v255 = vld [vmem:[%s217 + $0x64] sm:$0xf]
      %v256 = vld [vmem:[%s217 + $0x68] sm:$0xf]
      %v257 = vld [vmem:[%s217 + $0x6c] sm:$0xf]
      %v258 = vld [vmem:[%s217 + $0x70] sm:$0xf]
      %v259 = vld [vmem:[%s217 + $0x74] sm:$0xf]
      %v260 = vld [vmem:[%s217 + $0x78] sm:$0xf]
      %v261 = vld [vmem:[%s217 + $0x7c] sm:$0xf]
      %v262 = vld [vmem:[%s217 + $0x80] sm:$0xf]
      %v263 = vld [vmem:[%s217 + $0x84] sm:$0xf]
      %v264 = vld [vmem:[%s217 + $0x88] sm:$0xf]
      %v265 = vld [vmem:[%s217 + $0x8c] sm:$0xf]
      %v266 = vld [vmem:[%s217 + $0x90] sm:$0xf]
      %v267 = vld [vmem:[%s217 + $0x94] sm:$0xf]
      %v268 = vld [vmem:[%s217 + $0x98] sm:$0xf]
      %v269 = vld [vmem:[%s217 + $0x9c] sm:$0xf]
      %v270 = vld [vmem:[%s217 + $0xa0] sm:$0xf]
      %v271 = vld [vmem:[%s217 + $0xa4] sm:$0xf]
      %v272 = vld [vmem:[%s217 + $0xa8] sm:$0xf]
      %v273 = vld [vmem:[%s217 + $0xac] sm:$0xf]
      %v274 = vld [vmem:[%s217 + $0xb0] sm:$0xf]
      %v275 = vld [vmem:[%s217 + $0xb4] sm:$0xf]
      %v276 = vld [vmem:[%s217 + $0xb8] sm:$0xf]
      %v277 = vld [vmem:[%s217 + $0xbc] sm:$0xf]
      %v278 = vld [vmem:[%s217 + $0xc0] sm:$0xf]
      %v279 = vld [vmem:[%s217 + $0xc4] sm:$0xf]
      %v280 = vld [vmem:[%s217 + $0xc8] sm:$0xf]
      %v281 = vld [vmem:[%s217 + $0xcc] sm:$0xf]
      %v282 = vld [vmem:[%s217 + $0xd0] sm:$0xf]
      %v283 = vld [vmem:[%s217 + $0xd4] sm:$0xf]
      %v284 = vld [vmem:[%s217 + $0xd8] sm:$0xf]
      %v285 = vld [vmem:[%s217 + $0xdc] sm:$0xf]
      %v286 = vld [vmem:[%s217 + $0xe0] sm:$0xf]
      %v287 = vld [vmem:[%s217 + $0xe4] sm:$0xf]
      %v288 = vld [vmem:[%s217 + $0xe8] sm:$0xf]
      %v289 = vld [vmem:[%s217 + $0xec] sm:$0xf]
      %v290 = vld [vmem:[%s217 + $0xf0] sm:$0xf]
      %v291 = vld [vmem:[%s217 + $0xf4] sm:$0xf]
      %v292 = vld [vmem:[%s217 + $0xf8] sm:$0xf]
      %v293 = vld [vmem:[%s217 + $0xfc] sm:$0xf]
      %v294 = vld [vmem:[%s222] sm:$0xf]
      %v295 = vld [vmem:[%s222 + $0x4] sm:$0xf]
      %v296 = vld [vmem:[%s222 + $0x8] sm:$0xf]
      %v297 = vld [vmem:[%s222 + $0xc] sm:$0xf]
      %v298 = vld [vmem:[%s222 + $0x10] sm:$0xf]
      %v299 = vld [vmem:[%s222 + $0x14] sm:$0xf]
      %v300 = vld [vmem:[%s222 + $0x18] sm:$0xf]
      %v301 = vld [vmem:[%s222 + $0x1c] sm:$0xf]
      %v302 = vld [vmem:[%s222 + $0x20] sm:$0xf]
      %v303 = vld [vmem:[%s222 + $0x24] sm:$0xf]
      %v304 = vld [vmem:[%s222 + $0x28] sm:$0xf]
      %v305 = vld [vmem:[%s222 + $0x2c] sm:$0xf]
      %v306 = vld [vmem:[%s222 + $0x30] sm:$0xf]
      %v307 = vld [vmem:[%s222 + $0x34] sm:$0xf]
      %v308 = vld [vmem:[%s222 + $0x38] sm:$0xf]
      %v309 = vld [vmem:[%s222 + $0x3c] sm:$0xf]
      %v310 = vld [vmem:[%s225] sm:$0x1]
      %v312 = vperm.slane %v310, 0
      %v378 = vunpack.c.l.b16 %v230
      %v379 = vunpack.c.l.b16 %v231
      %v380 = vunpack.c.l.b16 %v232
      %v381 = vunpack.c.l.b16 %v233
      %v382 = vunpack.c.l.b16 %v234
      %v383 = vunpack.c.l.b16 %v235
      %v384 = vunpack.c.l.b16 %v236
      %v385 = vunpack.c.l.b16 %v237
      %v386 = vunpack.c.l.b16 %v238
      %v387 = vunpack.c.l.b16 %v239
      %v388 = vunpack.c.l.b16 %v240
      %v389 = vunpack.c.l.b16 %v241
      %v390 = vunpack.c.l.b16 %v242
      %v391 = vunpack.c.l.b16 %v243
      %v392 = vunpack.c.l.b16 %v244
      %v393 = vunpack.c.l.b16 %v245
      %v394 = vunpack.c.l.b16 %v246
      %v395 = vunpack.c.l.b16 %v247
      %v396 = vunpack.c.l.b16 %v248
      %v397 = vunpack.c.l.b16 %v249
      %v398 = vunpack.c.l.b16 %v250
      %v399 = vunpack.c.l.b16 %v251
      %v400 = vunpack.c.l.b16 %v252
      %v401 = vunpack.c.l.b16 %v253
      %v402 = vunpack.c.l.b16 %v254
      %v403 = vunpack.c.l.b16 %v255
      %v404 = vunpack.c.l.b16 %v256
      %v405 = vunpack.c.l.b16 %v257
      %v406 = vunpack.c.l.b16 %v258
      %v407 = vunpack.c.l.b16 %v259
      %v408 = vunpack.c.l.b16 %v260
      %v409 = vunpack.c.l.b16 %v261
      %v410 = vunpack.c.l.b16 %v262
      %v411 = vunpack.c.l.b16 %v263
      %v412 = vunpack.c.l.b16 %v264
      %v413 = vunpack.c.l.b16 %v265
      %v414 = vunpack.c.l.b16 %v266
      %v415 = vunpack.c.l.b16 %v267
      %v416 = vunpack.c.l.b16 %v268
      %v417 = vunpack.c.l.b16 %v269
      %v418 = vunpack.c.l.b16 %v270
      %v419 = vunpack.c.l.b16 %v271
      %v420 = vunpack.c.l.b16 %v272
      %v421 = vunpack.c.l.b16 %v273
      %v422 = vunpack.c.l.b16 %v274
      %v423 = vunpack.c.l.b16 %v275
      %v424 = vunpack.c.l.b16 %v276
      %v425 = vunpack.c.l.b16 %v277
      %v426 = vunpack.c.l.b16 %v278
      %v427 = vunpack.c.l.b16 %v279
      %v428 = vunpack.c.l.b16 %v280
      %v429 = vunpack.c.l.b16 %v281
      %v430 = vunpack.c.l.b16 %v282
      %v431 = vunpack.c.l.b16 %v283
      %v432 = vunpack.c.l.b16 %v284
      %v433 = vunpack.c.l.b16 %v285
      %v434 = vunpack.c.l.b16 %v286
      %v435 = vunpack.c.l.b16 %v287
      %v436 = vunpack.c.l.b16 %v288
      %v437 = vunpack.c.l.b16 %v289
      %v438 = vunpack.c.l.b16 %v290
      %v439 = vunpack.c.l.b16 %v291
      %v440 = vunpack.c.l.b16 %v292
      %v441 = vunpack.c.l.b16 %v293
      %v442 = vpack.c.b16 %v379, %v378
      %v443 = vpack.c.b16 %v381, %v380
      %v444 = vpack.c.b16 %v383, %v382
      %v445 = vpack.c.b16 %v385, %v384
      %v446 = vpack.c.b16 %v387, %v386
      %v447 = vpack.c.b16 %v389, %v388
      %v448 = vpack.c.b16 %v391, %v390
      %v449 = vpack.c.b16 %v393, %v392
      %v450 = vpack.c.b16 %v395, %v394
      %v451 = vpack.c.b16 %v397, %v396
      %v452 = vpack.c.b16 %v399, %v398
      %v453 = vpack.c.b16 %v401, %v400
      %v454 = vpack.c.b16 %v403, %v402
      %v455 = vpack.c.b16 %v405, %v404
      %v456 = vpack.c.b16 %v407, %v406
      %v457 = vpack.c.b16 %v409, %v408
      %v458 = vpack.c.b16 %v411, %v410
      %v459 = vpack.c.b16 %v413, %v412
      %v460 = vpack.c.b16 %v415, %v414
      %v461 = vpack.c.b16 %v417, %v416
      %v462 = vpack.c.b16 %v419, %v418
      %v463 = vpack.c.b16 %v421, %v420
      %v464 = vpack.c.b16 %v423, %v422
      %v465 = vpack.c.b16 %v425, %v424
      %v466 = vpack.c.b16 %v427, %v426
      %v467 = vpack.c.b16 %v429, %v428
      %v468 = vpack.c.b16 %v431, %v430
      %v469 = vpack.c.b16 %v433, %v432
      %v470 = vpack.c.b16 %v435, %v434
      %v471 = vpack.c.b16 %v437, %v436
      %v472 = vpack.c.b16 %v439, %v438
      %v473 = vpack.c.b16 %v441, %v440
      %v522 = vunpack.c.l.b16 %v294
      %v523 = vunpack.c.l.b16 %v295
      %v524 = vunpack.c.l.b16 %v296
      %v525 = vunpack.c.l.b16 %v297
      %v526 = vunpack.c.l.b16 %v298
      %v527 = vunpack.c.l.b16 %v299
      %v528 = vunpack.c.l.b16 %v300
      %v529 = vunpack.c.l.b16 %v301
      %v530 = vunpack.c.l.b16 %v302
      %v531 = vunpack.c.l.b16 %v303
      %v532 = vunpack.c.l.b16 %v304
      %v533 = vunpack.c.l.b16 %v305
      %v534 = vunpack.c.l.b16 %v306
      %v535 = vunpack.c.l.b16 %v307
      %v536 = vunpack.c.l.b16 %v308
      %v537 = vunpack.c.l.b16 %v309
      %v538 = vpack.c.b16 %v523, %v522
      %v539 = vpack.c.b16 %v525, %v524
      %v540 = vpack.c.b16 %v527, %v526
      %v541 = vpack.c.b16 %v529, %v528
      %v542 = vpack.c.b16 %v531, %v530
      %v543 = vpack.c.b16 %v533, %v532
      %v544 = vpack.c.b16 %v535, %v534
      %v545 = vpack.c.b16 %v537, %v536
      %554 = vmatpush.bf16.msra.mxu0 %v545
      %555 = vmatpush.bf16.msra.mxu0 %v544
      %556 = vmatpush.bf16.msra.mxu0 %v543
      %557 = vmatpush.bf16.msra.mxu0 %v542
      %558 = vmatpush.bf16.msra.mxu0 %v541
      %559 = vmatpush.bf16.msra.mxu0 %v540
      %560 = vmatpush.bf16.msra.mxu0 %v539
      %561 = vmatpush.bf16.msra.mxu0 %v538
      %562 = vmatmul.bf16.gmra.mxu0 %v442
      %v563 = vpop.f32.mrf.mxu0
      %v564 = vadd.f32 %v312, %v563
      %v565 = vpop.f32.mrf.mxu0
      %v566 = vadd.f32 %v312, %v565
      %567 = vmatmul.bf16.gmra.mxu0 %v443
      %v568 = vpop.f32.mrf.mxu0
      %v569 = vadd.f32 %v312, %v568
      %v570 = vpop.f32.mrf.mxu0
      %v571 = vadd.f32 %v312, %v570
      %572 = vmatmul.bf16.gmra.mxu0 %v444
      %v573 = vpop.f32.mrf.mxu0
      %v574 = vadd.f32 %v312, %v573
      %v575 = vpop.f32.mrf.mxu0
      %v576 = vadd.f32 %v312, %v575
      %577 = vmatmul.bf16.gmra.mxu0 %v445
      %v578 = vpop.f32.mrf.mxu0
      %v579 = vadd.f32 %v312, %v578
      %v580 = vpop.f32.mrf.mxu0
      %v581 = vadd.f32 %v312, %v580
      %582 = vmatmul.bf16.gmra.mxu0 %v446
      %v583 = vpop.f32.mrf.mxu0
      %v584 = vadd.f32 %v312, %v583
      %v585 = vpop.f32.mrf.mxu0
      %v586 = vadd.f32 %v312, %v585
      %587 = vmatmul.bf16.gmra.mxu0 %v447
      %v588 = vpop.f32.mrf.mxu0
      %v589 = vadd.f32 %v312, %v588
      %v590 = vpop.f32.mrf.mxu0
      %v591 = vadd.f32 %v312, %v590
      %592 = vmatmul.bf16.gmra.mxu0 %v448
      %v593 = vpop.f32.mrf.mxu0
      %v594 = vadd.f32 %v312, %v593
      %v595 = vpop.f32.mrf.mxu0
      %v596 = vadd.f32 %v312, %v595
      %597 = vmatmul.bf16.gmra.mxu0 %v449
      %v598 = vpop.f32.mrf.mxu0
      %v599 = vadd.f32 %v312, %v598
      %v600 = vpop.f32.mrf.mxu0
      %v601 = vadd.f32 %v312, %v600
      %602 = vmatmul.bf16.gmra.mxu0 %v450
      %v603 = vpop.f32.mrf.mxu0
      %v604 = vadd.f32 %v312, %v603
      %v605 = vpop.f32.mrf.mxu0
      %v606 = vadd.f32 %v312, %v605
      %607 = vmatmul.bf16.gmra.mxu0 %v451
      %v608 = vpop.f32.mrf.mxu0
      %v609 = vadd.f32 %v312, %v608
      %v610 = vpop.f32.mrf.mxu0
      %v611 = vadd.f32 %v312, %v610
      %612 = vmatmul.bf16.gmra.mxu0 %v452
      %v613 = vpop.f32.mrf.mxu0
      %v614 = vadd.f32 %v312, %v613
      %v615 = vpop.f32.mrf.mxu0
      %v616 = vadd.f32 %v312, %v615
      %617 = vmatmul.bf16.gmra.mxu0 %v453
      %v618 = vpop.f32.mrf.mxu0
      %v619 = vadd.f32 %v312, %v618
      %v620 = vpop.f32.mrf.mxu0
      %v621 = vadd.f32 %v312, %v620
      %622 = vmatmul.bf16.gmra.mxu0 %v454
      %v623 = vpop.f32.mrf.mxu0
      %v624 = vadd.f32 %v312, %v623
      %v625 = vpop.f32.mrf.mxu0
      %v626 = vadd.f32 %v312, %v625
      %627 = vmatmul.bf16.gmra.mxu0 %v455
      %v628 = vpop.f32.mrf.mxu0
      %v629 = vadd.f32 %v312, %v628
      %v630 = vpop.f32.mrf.mxu0
      %v631 = vadd.f32 %v312, %v630
      %632 = vmatmul.bf16.gmra.mxu0 %v456
      %v633 = vpop.f32.mrf.mxu0
      %v634 = vadd.f32 %v312, %v633
      %v635 = vpop.f32.mrf.mxu0
      %v636 = vadd.f32 %v312, %v635
      %637 = vmatmul.bf16.gmra.mxu0 %v457
      %v638 = vpop.f32.mrf.mxu0
      %v639 = vadd.f32 %v312, %v638
      %v640 = vpop.f32.mrf.mxu0
      %v641 = vadd.f32 %v312, %v640
      %642 = vmatmul.bf16.gmra.mxu0 %v458
      %v643 = vpop.f32.mrf.mxu0
      %v644 = vadd.f32 %v312, %v643
      %v645 = vpop.f32.mrf.mxu0
      %v646 = vadd.f32 %v312, %v645
      %647 = vmatmul.bf16.gmra.mxu0 %v459
      %v648 = vpop.f32.mrf.mxu0
      %v649 = vadd.f32 %v312, %v648
      %v650 = vpop.f32.mrf.mxu0
      %v651 = vadd.f32 %v312, %v650
      %652 = vmatmul.bf16.gmra.mxu0 %v460
      %v653 = vpop.f32.mrf.mxu0
      %v654 = vadd.f32 %v312, %v653
      %v655 = vpop.f32.mrf.mxu0
      %v656 = vadd.f32 %v312, %v655
      %657 = vmatmul.bf16.gmra.mxu0 %v461
      %v658 = vpop.f32.mrf.mxu0
      %v659 = vadd.f32 %v312, %v658
      %v660 = vpop.f32.mrf.mxu0
      %v661 = vadd.f32 %v312, %v660
      %662 = vmatmul.bf16.gmra.mxu0 %v462
      %v663 = vpop.f32.mrf.mxu0
      %v664 = vadd.f32 %v312, %v663
      %v665 = vpop.f32.mrf.mxu0
      %v666 = vadd.f32 %v312, %v665
      %667 = vmatmul.bf16.gmra.mxu0 %v463
      %v668 = vpop.f32.mrf.mxu0
      %v669 = vadd.f32 %v312, %v668
      %v670 = vpop.f32.mrf.mxu0
      %v671 = vadd.f32 %v312, %v670
      %672 = vmatmul.bf16.gmra.mxu0 %v464
      %v673 = vpop.f32.mrf.mxu0
      %v674 = vadd.f32 %v312, %v673
      %v675 = vpop.f32.mrf.mxu0
      %v676 = vadd.f32 %v312, %v675
      %677 = vmatmul.bf16.gmra.mxu0 %v465
      %v678 = vpop.f32.mrf.mxu0
      %v679 = vadd.f32 %v312, %v678
      %v680 = vpop.f32.mrf.mxu0
      %v681 = vadd.f32 %v312, %v680
      %682 = vmatmul.bf16.gmra.mxu0 %v466
      %v683 = vpop.f32.mrf.mxu0
      %v684 = vadd.f32 %v312, %v683
      %v685 = vpop.f32.mrf.mxu0
      %v686 = vadd.f32 %v312, %v685
      %687 = vmatmul.bf16.gmra.mxu0 %v467
      %v688 = vpop.f32.mrf.mxu0
      %v689 = vadd.f32 %v312, %v688
      %v690 = vpop.f32.mrf.mxu0
      %v691 = vadd.f32 %v312, %v690
      %692 = vmatmul.bf16.gmra.mxu0 %v468
      %v693 = vpop.f32.mrf.mxu0
      %v694 = vadd.f32 %v312, %v693
      %v695 = vpop.f32.mrf.mxu0
      %v696 = vadd.f32 %v312, %v695
      %697 = vmatmul.bf16.gmra.mxu0 %v469
      %v698 = vpop.f32.mrf.mxu0
      %v699 = vadd.f32 %v312, %v698
      %v700 = vpop.f32.mrf.mxu0
      %v701 = vadd.f32 %v312, %v700
      %702 = vmatmul.bf16.gmra.mxu0 %v470
      %v703 = vpop.f32.mrf.mxu0
      %v704 = vadd.f32 %v312, %v703
      %v705 = vpop.f32.mrf.mxu0
      %v706 = vadd.f32 %v312, %v705
      %707 = vmatmul.bf16.gmra.mxu0 %v471
      %v708 = vpop.f32.mrf.mxu0
      %v709 = vadd.f32 %v312, %v708
      %v710 = vpop.f32.mrf.mxu0
      %v711 = vadd.f32 %v312, %v710
      %712 = vmatmul.bf16.gmra.mxu0 %v472
      %v713 = vpop.f32.mrf.mxu0
      %v714 = vadd.f32 %v312, %v713
      %v715 = vpop.f32.mrf.mxu0
      %v716 = vadd.f32 %v312, %v715
      %717 = vmatmul.bf16.gmra.mxu0 %v473
      %v718 = vpop.f32.mrf.mxu0
      %v719 = vadd.f32 %v312, %v718
      %v720 = vpop.f32.mrf.mxu0
      %v721 = vadd.f32 %v312, %v720
      %722 = vdwg.mxu0
      %v723 = vmax.f32 %v564, 0.0
      %v724 = vmax.f32 %v566, 0.0
      %v725 = vmax.f32 %v569, 0.0
      %v726 = vmax.f32 %v571, 0.0
      %v727 = vmax.f32 %v574, 0.0
      %v728 = vmax.f32 %v576, 0.0
      %v729 = vmax.f32 %v579, 0.0
      %v730 = vmax.f32 %v581, 0.0
      %v731 = vmax.f32 %v584, 0.0
      %v732 = vmax.f32 %v586, 0.0
      %v733 = vmax.f32 %v589, 0.0
      %v734 = vmax.f32 %v591, 0.0
      %v735 = vmax.f32 %v594, 0.0
      %v736 = vmax.f32 %v596, 0.0
      %v737 = vmax.f32 %v599, 0.0
      %v738 = vmax.f32 %v601, 0.0
      %v739 = vmax.f32 %v604, 0.0
      %v740 = vmax.f32 %v606, 0.0
      %v741 = vmax.f32 %v609, 0.0
      %v742 = vmax.f32 %v611, 0.0
      %v743 = vmax.f32 %v614, 0.0
      %v744 = vmax.f32 %v616, 0.0
      %v745 = vmax.f32 %v619, 0.0
      %v746 = vmax.f32 %v621, 0.0
      %v747 = vmax.f32 %v624, 0.0
      %v748 = vmax.f32 %v626, 0.0
      %v749 = vmax.f32 %v629, 0.0
      %v750 = vmax.f32 %v631, 0.0
      %v751 = vmax.f32 %v634, 0.0
      %v752 = vmax.f32 %v636, 0.0
      %v753 = vmax.f32 %v639, 0.0
      %v754 = vmax.f32 %v641, 0.0
      %v755 = vmax.f32 %v644, 0.0
      %v756 = vmax.f32 %v646, 0.0
      %v757 = vmax.f32 %v649, 0.0
      %v758 = vmax.f32 %v651, 0.0
      %v759 = vmax.f32 %v654, 0.0
      %v760 = vmax.f32 %v656, 0.0
      %v761 = vmax.f32 %v659, 0.0
      %v762 = vmax.f32 %v661, 0.0
      %v763 = vmax.f32 %v664, 0.0
      %v764 = vmax.f32 %v666, 0.0
      %v765 = vmax.f32 %v669, 0.0
      %v766 = vmax.f32 %v671, 0.0
      %v767 = vmax.f32 %v674, 0.0
      %v768 = vmax.f32 %v676, 0.0
      %v769 = vmax.f32 %v679, 0.0
      %v770 = vmax.f32 %v681, 0.0
      %v771 = vmax.f32 %v684, 0.0
      %v772 = vmax.f32 %v686, 0.0
      %v773 = vmax.f32 %v689, 0.0
      %v774 = vmax.f32 %v691, 0.0
      %v775 = vmax.f32 %v694, 0.0
      %v776 = vmax.f32 %v696, 0.0
      %v777 = vmax.f32 %v699, 0.0
      %v778 = vmax.f32 %v701, 0.0
      %v779 = vmax.f32 %v704, 0.0
      %v780 = vmax.f32 %v706, 0.0
      %v781 = vmax.f32 %v709, 0.0
      %v782 = vmax.f32 %v711, 0.0
      %v783 = vmax.f32 %v714, 0.0
      %v784 = vmax.f32 %v716, 0.0
      %v785 = vmax.f32 %v719, 0.0
      %v786 = vmax.f32 %v721, 0.0
      %v787 = vld [vmem:[%s3] sm:$0xff]
      %789 = vst [vmem:[#allocation1] ss:$4 sm:$0xff] %v787
      %v790 = vld.sshfl [vmem:[#allocation1] sm:$0xff pattern:$0x73625140]
      %v791 = vld.sshfl [vmem:[#allocation1 + $0x8] sm:$0xff pattern:$0x73625140]
      %v792 = vld.sshfl [vmem:[#allocation1 + $0x10] sm:$0xff pattern:$0x73625140]
      %v793 = vld.sshfl [vmem:[#allocation1 + $0x18] sm:$0xff pattern:$0x73625140]
      %798 = vmatpush.msra.mxu0 %v738
      %799 = vmatpush.msra.mxu0 %v737
      %800 = vmatpush.msra.mxu0 %v736
      %801 = vmatpush.msra.mxu0 %v735
      %802 = vmatpush.msra.mxu0 %v734
      %803 = vmatpush.msra.mxu0 %v733
      %804 = vmatpush.msra.mxu0 %v732
      %805 = vmatpush.msra.mxu0 %v731
      %806 = vmatpush.msra.mxu0 %v730
      %807 = vmatpush.msra.mxu0 %v729
      %808 = vmatpush.msra.mxu0 %v728
      %809 = vmatpush.msra.mxu0 %v727
      %810 = vmatpush.msra.mxu0 %v726
      %811 = vmatpush.msra.mxu0 %v725
      %812 = vmatpush.msra.mxu0 %v724
      %813 = vmatpush.msra.mxu0 %v723
      %814 = vmatmul.f32.gmra.mxu0 %v790
      %v815 = vpop.f32.mrf.mxu0
      %v816 = vadd.f32 0.0, %v815
      %817 = vdwg.mxu0
      %818 = vmatpush.msra.mxu0 %v754
      %819 = vmatpush.msra.mxu0 %v753
      %820 = vmatpush.msra.mxu0 %v752
      %821 = vmatpush.msra.mxu0 %v751
      %822 = vmatpush.msra.mxu0 %v750
      %823 = vmatpush.msra.mxu0 %v749
      %824 = vmatpush.msra.mxu0 %v748
      %825 = vmatpush.msra.mxu0 %v747
      %826 = vmatpush.msra.mxu0 %v746
      %827 = vmatpush.msra.mxu0 %v745
      %828 = vmatpush.msra.mxu0 %v744
      %829 = vmatpush.msra.mxu0 %v743
      %830 = vmatpush.msra.mxu0 %v742
      %831 = vmatpush.msra.mxu0 %v741
      %832 = vmatpush.msra.mxu0 %v740
      %833 = vmatpush.msra.mxu0 %v739
      %834 = vmatmul.f32.gmra.mxu0 %v791
      %v835 = vpop.f32.mrf.mxu0
      %v836 = vadd.f32 %v816, %v835
      %837 = vdwg.mxu0
      %838 = vmatpush.msra.mxu0 %v770
      %839 = vmatpush.msra.mxu0 %v769
      %840 = vmatpush.msra.mxu0 %v768
      %841 = vmatpush.msra.mxu0 %v767
      %842 = vmatpush.msra.mxu0 %v766
      %843 = vmatpush.msra.mxu0 %v765
      %844 = vmatpush.msra.mxu0 %v764
      %845 = vmatpush.msra.mxu0 %v763
      %846 = vmatpush.msra.mxu0 %v762
      %847 = vmatpush.msra.mxu0 %v761
      %848 = vmatpush.msra.mxu0 %v760
      %849 = vmatpush.msra.mxu0 %v759
      %850 = vmatpush.msra.mxu0 %v758
      %851 = vmatpush.msra.mxu0 %v757
      %852 = vmatpush.msra.mxu0 %v756
      %853 = vmatpush.msra.mxu0 %v755
      %854 = vmatmul.f32.gmra.mxu0 %v792
      %v855 = vpop.f32.mrf.mxu0
      %v856 = vadd.f32 %v836, %v855
      %857 = vdwg.mxu0
      %858 = vmatpush.msra.mxu0 %v786
      %859 = vmatpush.msra.mxu0 %v785
      %860 = vmatpush.msra.mxu0 %v784
      %861 = vmatpush.msra.mxu0 %v783
      %862 = vmatpush.msra.mxu0 %v782
      %863 = vmatpush.msra.mxu0 %v781
      %864 = vmatpush.msra.mxu0 %v780
      %865 = vmatpush.msra.mxu0 %v779
      %866 = vmatpush.msra.mxu0 %v778
      %867 = vmatpush.msra.mxu0 %v777
      %868 = vmatpush.msra.mxu0 %v776
      %869 = vmatpush.msra.mxu0 %v775
      %870 = vmatpush.msra.mxu0 %v774
      %871 = vmatpush.msra.mxu0 %v773
      %872 = vmatpush.msra.mxu0 %v772
      %873 = vmatpush.msra.mxu0 %v771
      %874 = vmatmul.f32.gmra.mxu0 %v793
      %v875 = vpop.f32.mrf.mxu0
      %v876 = vadd.f32 %v856, %v875
      %877 = vdwg.mxu0
      %878 = vst [vmem:[%s229] sm:$0x3] %v876
      %p879 = scmp.lt.s32.totalorder %s15, 1
      %s880 = scalar_select %p879, %s15, 1
      %s881 = smul.addr %s880, 2
      %s882 = scalar_lea.vmem %s4, %s881
      // Predicated region
      $region37: #{rgbd_cnn_forward.2} parent=35 // pred_check
        %p883 = pneg %p132
      $region38: #{rgbd_cnn_forward.2} parent=35 // pred_check_branch
        %885 = sbr.rel (%p883) target = $region40
      $region39: #{rgbd_cnn_forward.2} parent=35 // pred_region
        _
      $region40: #{rgbd_cnn_forward.2} parent=35 // pred_fallthru
        _
    $region36: #{rgbd_cnn_forward.2} parent=5 // pred_fallthru
      _
    %p886 = scmp.le.s32.totalorder 2, %s10
    // Predicated region
    $region41: #{rgbd_cnn_forward.2} parent=5 // pred_check
      %p887 = pneg %p886
    $region42: #{rgbd_cnn_forward.2} parent=5 // pred_check_branch
      %889 = sbr.rel (%p887) target = $region44
    $region43: #{rgbd_cnn_forward.2} parent=5 // pred_region
      %s890 = ssub.s32 %s10, 2
      // Predicated region
      $region45: #{rgbd_cnn_forward.2} parent=43 // pred_check
        %p891 = pneg %p138
      $region46: #{rgbd_cnn_forward.2} parent=43 // pred_check_branch
        %893 = sbr.rel (%p891) target = $region48
      $region47: #{rgbd_cnn_forward.2} parent=43 // pred_region
        %p894 = scmp.lt.s32.totalorder %s16, 1
        %s895 = scalar_select %p894, %s16, 1
        %s896 = smul.addr %s895, 2
        %s897 = scalar_lea.vmem %s4, %s896
      $region48: #{rgbd_cnn_forward.2} parent=43 // pred_fallthru
        _
    $region44: #{rgbd_cnn_forward.2} parent=5 // pred_fallthru
      _
  $region6: #{rgbd_cnn_forward.2} parent=0 // loop_footer
    %s14 = sadd.s32 1, %s10
  $region7: #{rgbd_cnn_forward.2} parent=0 // loop_footer_branch
    %9 = sbr.rel target = $region3
  $region8: #{rgbd_cnn_forward.2} parent=0 // loop_exit
    _

</llo_original>
